<compile_context>
chip_gen: v5e
topology: v5e:2x2
jax: 0.10.0
libtpu: 0.0.40
codegen_flags: <defaults>
</compile_context>

<pallas_src>
import jax
import jax.numpy as jnp
from jax import lax
from jax.experimental import pallas as pl
from jax.experimental.pallas import tpu as pltpu

ENCODING_DIM = 128
H1 = 128
H2 = 64
OUT = 1


def _prelu(x, a):
    # PReLU with a single learnable parameter (PyTorch default num_parameters=1).
    return jnp.where(x >= 0, x, a * x)


def mlp_kernel(x_ref, w1_ref, b1_ref, w2_ref, b2_ref, w3_ref, s_ref, o_ref):
    # Scalars from SMEM: [alpha1, alpha2, alpha3, bias3]
    a1 = s_ref[0]
    a2 = s_ref[1]
    a3 = s_ref[2]
    b3 = s_ref[3]

    x = x_ref[...].astype(jnp.bfloat16)                        # (TB, 128)

    # layer1: Linear(128,128) + PReLU  (MXU, f32 accumulate)
    h = jnp.dot(x, w1_ref[...], preferred_element_type=jnp.float32)
    h = _prelu(h + b1_ref[...], a1)                            # (TB, 128) f32

    # layer2: Identity ; layer3 Dropout -> identity at inference.

    # layer3: Linear(128,64) + PReLU
    h = jnp.dot(h.astype(jnp.bfloat16), w2_ref[...],
                preferred_element_type=jnp.float32)
    h = _prelu(h + b2_ref[...], a2)                            # (TB, 64) f32

    # layer4: Linear(64,1) + PReLU, computed as (1,64) @ (TB,64)^T -> (1,TB)
    # so the result (and the store) is lane-dense and the pathological N=1
    # matmul shape is avoided.
    y = lax.dot_general(w3_ref[...], h.astype(jnp.bfloat16),
                        dimension_numbers=(((1,), (1,)), ((), ())),
                        preferred_element_type=jnp.float32)    # (1, TB) f32
    y = _prelu(y + b3, a3)

    o_ref[...] = y.astype(o_ref.dtype)


def _round_up(n, m):
    return (n + m - 1) // m * m


def neural_network_forward(x, params, *, tile_b=512):
    """x: [B, ENCODING_DIM] float32. Returns [B, 1] float32."""
    B, D = x.shape
    assert D == ENCODING_DIM
    w1, b1, a1, w2, b2, a2, w3, b3, a3 = params

    # --- batch tile selection (128-aligned, large, prefer >= 2 grid steps) ---
    tb = max(128, min(_round_up(tile_b, 128), _round_up(B, 128)))
    if _round_up(B, tb) == tb and tb >= 256:
        # Single grid step would leave one of v7x's two TensorCores idle.
        tb = max(128, _round_up(tb // 2, 128))
    Bp = _round_up(B, tb)
    if Bp != B:
        x = jnp.pad(x, ((0, Bp - B), (0, 0)))
    grid = (Bp // tb,)

    # bf16 matmul operands (MXU native on v6e/v7x); biases / scalars stay f32.
    w1b = w1.astype(jnp.bfloat16)
    w2b = w2.astype(jnp.bfloat16)
    w3b = w3.astype(jnp.bfloat16)                              # (1, 64) row
    b1f = b1.astype(jnp.float32).reshape(1, H1)
    b2f = b2.astype(jnp.float32).reshape(1, H2)
    scalars = jnp.stack([jnp.asarray(a1, jnp.float32).reshape(()),
                         jnp.asarray(a2, jnp.float32).reshape(()),
                         jnp.asarray(a3, jnp.float32).reshape(()),
                         jnp.asarray(b3, jnp.float32).reshape(())])

    def resident(shape):
        # Weight / bias blocks: same full block every grid step (fetched once).
        return pl.BlockSpec(shape, lambda i: tuple(0 for _ in shape))

    out = pl.pallas_call(
        mlp_kernel,
        out_shape=jax.ShapeDtypeStruct((1, Bp), jnp.float32),
        grid_spec=pltpu.PrefetchScalarGridSpec(
            num_scalar_prefetch=0,
            grid=grid,
            in_specs=[
                pl.BlockSpec((tb, ENCODING_DIM), lambda i: (i, 0)),   # x tile
                resident((ENCODING_DIM, H1)),                          # w1 (bf16)
                resident((1, H1)),                                     # b1 (f32)
                resident((H1, H2)),                                    # w2 (bf16)
                resident((1, H2)),                                     # b2 (f32)
                resident((1, H2)),                                     # w3 row (bf16)
                pl.BlockSpec(memory_space=pltpu.MemorySpace.SMEM),     # [a1,a2,a3,b3]
            ],
            out_specs=pl.BlockSpec((1, tb), lambda i: (0, i)),         # lane-dense
        ),
        compiler_params=pltpu.CompilerParams(
            dimension_semantics=("parallel",),
            vmem_limit_bytes=32 * 1024 * 1024,
        ),
    )(x, w1b, b1f, w2b, b2f, w3b, scalars)

    # (1, Bp) -> (B, 1): layout plumbing only.
    return out.reshape(-1)[:B].reshape(B, OUT)


def init_params(key):
    """Kernel-layout params: Linear weights stored (in, out) except the final
    layer, kept as its PyTorch (out=1, in=64) row.  PReLU alphas init to 0.25
    (PyTorch default)."""
    k1, k2, k3, k4, k5, k6 = jax.random.split(key, 6)
    w1 = jax.random.normal(k1, (ENCODING_DIM, H1), jnp.float32) * 0.05
    b1 = jax.random.normal(k2, (1, H1), jnp.float32) * 0.05
    w2 = jax.random.normal(k3, (H1, H2), jnp.float32) * 0.05
    b2 = jax.random.normal(k4, (1, H2), jnp.float32) * 0.05
    w3 = jax.random.normal(k5, (OUT, H2), jnp.float32) * 0.05   # (1, 64)
    b3 = jax.random.normal(k6, (), jnp.float32) * 0.05
    a1 = jnp.asarray(0.25, jnp.float32)
    a2 = jnp.asarray(0.25, jnp.float32)
    a3 = jnp.asarray(0.25, jnp.float32)
    return (w1, b1, a1, w2, b2, a2, w3, b3, a3)


def reference_forward(x, params):
    w1, b1, a1, w2, b2, a2, w3, b3, a3 = params
    h = _prelu(x @ w1 + b1, a1)
    h = _prelu(h @ w2 + b2, a2)
    return _prelu(h @ w3.T + b3, a3)


if __name__ == "__main__":
    key = jax.random.PRNGKey(0)
    kx, kp = jax.random.split(key)

    B = 300  # small, non-tile-multiple batch: exercises padding + a 2-step grid
    x = jax.random.normal(kx, (B, ENCODING_DIM), jnp.float32)
    params = init_params(kp)

    out = jax.block_until_ready(neural_network_forward(x, params))
    ref = reference_forward(x, params)

    assert out.shape == (B, OUT), out.shape
    # bf16 matmul operands (f32 accumulation) -> loosened tolerance vs f32 ref.
    assert jnp.allclose(out, ref, atol=3e-2, rtol=3e-2), float(
        jnp.max(jnp.abs(out - ref)))
    print("KERNEL_OK")
</pallas_src>

<mosaic_0001>
module attributes {stable_mosaic.version = 11 : i64} {
  func.func @mlp_kernel(%arg0: i32, %arg1: memref<256x128xf32, #tpu.memory_space<vmem>>, %arg2: memref<128x128xbf16, #tpu.memory_space<vmem>>, %arg3: memref<1x128xf32, #tpu.memory_space<vmem>>, %arg4: memref<128x64xbf16, #tpu.memory_space<vmem>>, %arg5: memref<1x64xf32, #tpu.memory_space<vmem>>, %arg6: memref<1x64xbf16, #tpu.memory_space<vmem>>, %arg7: memref<4xf32, #tpu.memory_space<smem>>, %arg8: memref<1x256xf32, #tpu.memory_space<vmem>>) attributes {dimension_semantics = [#tpu.dimension_semantics<parallel>], iteration_bounds = array<i64: 2>, scalar_prefetch = 0 : i64, scratch_operands = 0 : i64, tpu.core_type = #tpu.core_type<tc>, window_params = [{transform_indices = @transform_0, window_bounds = array<i64: 256, 128>}, {pipeline_mode = #tpu.pipeline_mode<synchronous>, transform_indices = @transform_1, window_bounds = array<i64: 128, 128>}, {pipeline_mode = #tpu.pipeline_mode<synchronous>, transform_indices = @transform_2, window_bounds = array<i64: 1, 128>}, {pipeline_mode = #tpu.pipeline_mode<synchronous>, transform_indices = @transform_3, window_bounds = array<i64: 128, 64>}, {pipeline_mode = #tpu.pipeline_mode<synchronous>, transform_indices = @transform_4, window_bounds = array<i64: 1, 64>}, {pipeline_mode = #tpu.pipeline_mode<synchronous>, transform_indices = @transform_5, window_bounds = array<i64: 1, 64>}, {transform_indices = @transform_6, window_bounds = array<i64: 4>}, {transform_indices = @transform_7, window_bounds = array<i64: 1, 256>}]} {
    %c0 = arith.constant 0 : index
    %0 = memref.load %arg7[%c0] : memref<4xf32, #tpu.memory_space<smem>>
    %c1 = arith.constant 1 : index
    %1 = memref.load %arg7[%c1] : memref<4xf32, #tpu.memory_space<smem>>
    %c2 = arith.constant 2 : index
    %2 = memref.load %arg7[%c2] : memref<4xf32, #tpu.memory_space<smem>>
    %c3 = arith.constant 3 : index
    %3 = memref.load %arg7[%c3] : memref<4xf32, #tpu.memory_space<smem>>
    %c0_0 = arith.constant 0 : index
    %c0_1 = arith.constant 0 : index
    %4 = vector.load %arg1[%c0_0, %c0_1] : memref<256x128xf32, #tpu.memory_space<vmem>>, vector<256x128xf32>
    %5 = arith.truncf %4 : vector<256x128xf32> to vector<256x128xbf16>
    %c0_2 = arith.constant 0 : index
    %c0_3 = arith.constant 0 : index
    %6 = vector.load %arg2[%c0_2, %c0_3] : memref<128x128xbf16, #tpu.memory_space<vmem>>, vector<128x128xbf16>
    %cst = arith.constant dense<0.000000e+00> : vector<256x128xf32>
    %7 = tpu.matmul %5, %6, %cst {dimension_numbers = #tpu.dot_dimension_numbers<[1], [0], [0], [1], [0, 0, 1, 1], [], []>} : vector<256x128xbf16>, vector<128x128xbf16>, vector<256x128xf32> -> vector<256x128xf32>
    %c0_4 = arith.constant 0 : index
    %c0_5 = arith.constant 0 : index
    %8 = vector.load %arg3[%c0_4, %c0_5] : memref<1x128xf32, #tpu.memory_space<vmem>>, vector<1x128xf32>
    %9 = vector.broadcast %8 : vector<1x128xf32> to vector<256x128xf32>
    %10 = arith.addf %7, %9 : vector<256x128xf32>
    %cst_6 = arith.constant 0.000000e+00 : f32
    %11 = vector.broadcast %cst_6 : f32 to vector<256x128xf32>
    %12 = arith.cmpf oge, %10, %11 : vector<256x128xf32>
    %13 = vector.broadcast %0 : f32 to vector<256x128xf32>
    %14 = arith.mulf %13, %10 : vector<256x128xf32>
    %15 = arith.select %12, %10, %14 : vector<256x128xi1>, vector<256x128xf32>
    %16 = arith.truncf %15 : vector<256x128xf32> to vector<256x128xbf16>
    %c0_7 = arith.constant 0 : index
    %c0_8 = arith.constant 0 : index
    %17 = vector.load %arg4[%c0_7, %c0_8] : memref<128x64xbf16, #tpu.memory_space<vmem>>, vector<128x64xbf16>
    %cst_9 = arith.constant dense<0.000000e+00> : vector<256x64xf32>
    %18 = tpu.matmul %16, %17, %cst_9 {dimension_numbers = #tpu.dot_dimension_numbers<[1], [0], [0], [1], [0, 0, 1, 1], [], []>} : vector<256x128xbf16>, vector<128x64xbf16>, vector<256x64xf32> -> vector<256x64xf32>
    %c0_10 = arith.constant 0 : index
    %c0_11 = arith.constant 0 : index
    %19 = vector.load %arg5[%c0_10, %c0_11] : memref<1x64xf32, #tpu.memory_space<vmem>>, vector<1x64xf32>
    %20 = vector.broadcast %19 : vector<1x64xf32> to vector<256x64xf32>
    %21 = arith.addf %18, %20 : vector<256x64xf32>
    %cst_12 = arith.constant 0.000000e+00 : f32
    %22 = vector.broadcast %cst_12 : f32 to vector<256x64xf32>
    %23 = arith.cmpf oge, %21, %22 : vector<256x64xf32>
    %24 = vector.broadcast %1 : f32 to vector<256x64xf32>
    %25 = arith.mulf %24, %21 : vector<256x64xf32>
    %26 = arith.select %23, %21, %25 : vector<256x64xi1>, vector<256x64xf32>
    %c0_13 = arith.constant 0 : index
    %c0_14 = arith.constant 0 : index
    %27 = vector.load %arg6[%c0_13, %c0_14] : memref<1x64xbf16, #tpu.memory_space<vmem>>, vector<1x64xbf16>
    %28 = arith.truncf %26 : vector<256x64xf32> to vector<256x64xbf16>
    %cst_15 = arith.constant dense<0.000000e+00> : vector<1x256xf32>
    %29 = tpu.matmul %27, %28, %cst_15 {dimension_numbers = #tpu.dot_dimension_numbers<[1], [1], [0], [0], [0, 0, 1, 0], [], []>} : vector<1x64xbf16>, vector<256x64xbf16>, vector<1x256xf32> -> vector<1x256xf32>
    %30 = vector.broadcast %3 : f32 to vector<1x256xf32>
    %31 = arith.addf %29, %30 : vector<1x256xf32>
    %cst_16 = arith.constant 0.000000e+00 : f32
    %32 = vector.broadcast %cst_16 : f32 to vector<1x256xf32>
    %33 = arith.cmpf oge, %31, %32 : vector<1x256xf32>
    %34 = vector.broadcast %2 : f32 to vector<1x256xf32>
    %35 = arith.mulf %34, %31 : vector<1x256xf32>
    %36 = arith.select %33, %31, %35 : vector<1x256xi1>, vector<1x256xf32>
    %c0_17 = arith.constant 0 : index
    %c0_18 = arith.constant 0 : index
    %37 = vector.load %arg8[%c0_17, %c0_18] : memref<1x256xf32, #tpu.memory_space<vmem>>, vector<1x256xf32>
    tpu.vector_store %arg8[%c0_17, %c0_18], %36 {strides = array<i32>} : memref<1x256xf32, #tpu.memory_space<vmem>>, vector<1x256xf32>,
    return
  }
  func.func @transform_0(%arg0: i32) -> (i32, i32) {
    %c0_i32 = arith.constant 0 : i32
    %c0_i32_0 = arith.constant 0 : i32
    return %arg0, %c0_i32 : i32, i32
  }
  func.func @transform_1(%arg0: i32) -> (i32, i32) {
    %c0_i32 = arith.constant 0 : i32
    %c0_i32_0 = arith.constant 0 : i32
    %c0_i32_1 = arith.constant 0 : i32
    return %c0_i32, %c0_i32_0 : i32, i32
  }
  func.func @transform_2(%arg0: i32) -> (i32, i32) {
    %c0_i32 = arith.constant 0 : i32
    %c0_i32_0 = arith.constant 0 : i32
    %c0_i32_1 = arith.constant 0 : i32
    return %c0_i32, %c0_i32_0 : i32, i32
  }
  func.func @transform_3(%arg0: i32) -> (i32, i32) {
    %c0_i32 = arith.constant 0 : i32
    %c0_i32_0 = arith.constant 0 : i32
    %c0_i32_1 = arith.constant 0 : i32
    return %c0_i32, %c0_i32_0 : i32, i32
  }
  func.func @transform_4(%arg0: i32) -> (i32, i32) {
    %c0_i32 = arith.constant 0 : i32
    %c0_i32_0 = arith.constant 0 : i32
    %c0_i32_1 = arith.constant 0 : i32
    return %c0_i32, %c0_i32_0 : i32, i32
  }
  func.func @transform_5(%arg0: i32) -> (i32, i32) {
    %c0_i32 = arith.constant 0 : i32
    %c0_i32_0 = arith.constant 0 : i32
    %c0_i32_1 = arith.constant 0 : i32
    return %c0_i32, %c0_i32_0 : i32, i32
  }
  func.func @transform_6(%arg0: i32) -> i32 {
    %c0_i32 = arith.constant 0 : i32
    %c0_i32_0 = arith.constant 0 : i32
    return %c0_i32 : i32
  }
  func.func @transform_7(%arg0: i32) -> (i32, i32) {
    %c0_i32 = arith.constant 0 : i32
    %c0_i32_0 = arith.constant 0 : i32
    return %c0_i32, %arg0 : i32, i32
  }
}

</mosaic_0001>

<llo_original>
// kernel: tpu_custom_call.1
$region0: #{tpu_custom_call.1}
  #allocation0 [shape = 'u32[]', space=smem, size = 0x4, offset = 0x4, fixed_abs, tag = 'smem constant byte address 0x4 - core index']
  #allocation1 [shape = 'u32[72,128]{1,0:T(1,128)}', space=vmem, size = 0x9000, scoped, tag = 'internal scratch']
  %s0 = inlined_call_operand.hbm [shape: f32[512,128], index: 0, kind: input, shape index: {}]
  %s1 = inlined_call_operand.vmem [shape: bf16[128,128], index: 1, kind: input, shape index: {}]
  %s2 = inlined_call_operand.vmem [shape: f32[1,128], index: 2, kind: input, shape index: {}]
  %s3 = inlined_call_operand.vmem [shape: bf16[128,64], index: 3, kind: input, shape index: {}]
  %s4 = inlined_call_operand.vmem [shape: f32[1,64], index: 4, kind: input, shape index: {}]
  %s5 = inlined_call_operand.vmem [shape: bf16[1,64], index: 5, kind: input, shape index: {}]
  %s6 = inlined_call_operand.vmem [shape: f32[4], index: 6, kind: input, shape index: {}]
  %s7 = inlined_call_operand.hbm [shape: f32[1,512], index: 7, kind: output, shape index: {}]
  %s8 = sld [smem:[#allocation0]]
  $region69: #{tpu_custom_call.1} parent=0
    _
  %s10 = ssub.s32 1, %s8
  %s11 = scalar_select 0, %s10, %s8
  $region1: #{tpu_custom_call.1} parent=0
    #allocation2 [shape = 'u8[262144]{0}', space=vmem, size = 0x40000, scoped, tag = 'input window, operand 0']
    #allocation3 [shape = 's32[2]{0}', space=sflag, size = 0x8, scoped, tag = 'scoped memory for tpu_custom_call.1']
    #allocation4 [shape = 's32[2]{0}', space=sflag, size = 0x8, scoped, tag = 'scoped memory for tpu_custom_call.1']
    #allocation5 [shape = 's32[2]{0}', space=sflag, size = 0x8, scoped, tag = 'scoped memory for tpu_custom_call.1']
    #allocation6 [shape = 'u8[512]{0}', space=smem, size = 0x200, scoped, tag = 'input window, operand 6, single buffered']
    #allocation7 [shape = 'u8[2048]{0}', space=vmem, size = 0x800, scoped, tag = 'output window, operand 0']
    %12 = vsyncpa [#allocation3], 0
    %s13 = scalar_lea.sflag [#allocation3], 1
    %14 = vsyncpa %s13, 0
    %15 = vsyncpa [#allocation5], 0
    %16 = vsyncpa [#allocation4], 0
    %s17 = scalar_lea.sflag [#allocation4], 1
    %18 = vsyncpa %s17, 0
    loop: start=0, step=1, limit=4
    $region2: #{tpu_custom_call.1} parent=1 // loop_pre_header
      _
    $region3: #{tpu_custom_call.1} parent=1 // loop_header
      %s20 = sphi 0, %s24
      %p21 = scmp.ge.s32.totalorder %s20, 4
      %s30 = sphi 0, %s32
      %s33 = sphi 0, %s30
      %s34 = sphi 0, %s33
      %s50 = sphi 0, %s34
      %s54 = sphi 0, %s54
      %s56 = sphi 0, %s54
      %s57 = sphi 0, %s56
      %s71 = sphi 0, %s57
      %s75 = sphi 0, %s75
      %s77 = sphi 0, %s75
      %s78 = sphi 0, %s77
      %s92 = sphi 0, %s78
      %s96 = sphi 0, %s96
      %s98 = sphi 0, %s96
      %s99 = sphi 0, %s98
      %s113 = sphi 0, %s99
      %s117 = sphi 0, %s117
      %s119 = sphi 0, %s117
      %s120 = sphi 0, %s119
      %s134 = sphi 0, %s120
      %s138 = sphi 0, %s138
      %s140 = sphi 0, %s138
      %s141 = sphi 0, %s140
      %s155 = sphi 0, %s141
      %s159 = sphi 0, %s159
      %s161 = sphi 0, %s159
      %s162 = sphi 0, %s161
      %s176 = sphi 0, %s162
      %s182 = sphi 0, %s184
      %s185 = sphi 0, %s182
      %s186 = sphi 0, %s185
      %s202 = sphi 0, %s186
    $region4: #{tpu_custom_call.1} parent=1 // loop_header_branch
      %23 = sbr.rel (%p21) target = $region8
    $region5: #{tpu_custom_call.1} parent=1 // loop_body
      %s25 = ssub.s32 %s20, 1
      %s26 = ssub.s32 %s20, 2
      %s27 = sadd.s32 %s20, 1
      %s28 = ssub.s32 %s20, %s27
      %p29 = scmp.eq.s32.totalorder %s28, 0
      %s31 = sadd.s32 %s30, 1
      %s32 = scalar_select %p29, %s30, %s31
      %p35 = pneg %p29
      %p36 = scmp.eq.s32.totalorder %s20, 1
      %p37 = por %p35, %p36
      %p38 = scmp.ne.s32.totalorder %s30, %s33
      %p39 = scmp.eq.s32.totalorder %s20, 0
      %p40 = por %p38, %p39
      %p41 = scmp.ne.s32.totalorder %s30, %s33
      %p42 = scmp.eq.s32.totalorder %s25, 1
      %p43 = por %p41, %p42
      %p44 = scmp.ne.s32.totalorder %s33, %s34
      %p45 = scmp.eq.s32.totalorder %s25, 0
      %p46 = por %p44, %p45
      %p47 = scmp.ne.s32.totalorder %s33, %s34
      %p48 = scmp.eq.s32.totalorder %s26, 1
      %p49 = por %p47, %p48
      %p51 = scmp.ne.s32.totalorder %s34, %s50
      %p52 = scmp.eq.s32.totalorder %s26, 0
      %p53 = por %p51, %p52
      %s55 = sadd.s32 %s54, 1
      %p58 = scmp.eq.s32.totalorder %s20, 1
      %p59 = scmp.ne.s32.totalorder %s54, %s56
      %p60 = scmp.eq.s32.totalorder %s20, 0
      %p61 = por %p59, %p60
      %p62 = scmp.ne.s32.totalorder %s54, %s56
      %p63 = scmp.eq.s32.totalorder %s25, 1
      %p64 = por %p62, %p63
      %p65 = scmp.ne.s32.totalorder %s56, %s57
      %p66 = scmp.eq.s32.totalorder %s25, 0
      %p67 = por %p65, %p66
      %p68 = scmp.ne.s32.totalorder %s56, %s57
      %p69 = scmp.eq.s32.totalorder %s26, 1
      %p70 = por %p68, %p69
      %p72 = scmp.ne.s32.totalorder %s57, %s71
      %p73 = scmp.eq.s32.totalorder %s26, 0
      %p74 = por %p72, %p73
      %s76 = sadd.s32 %s75, 1
      %p79 = scmp.eq.s32.totalorder %s20, 1
      %p80 = scmp.ne.s32.totalorder %s75, %s77
      %p81 = scmp.eq.s32.totalorder %s20, 0
      %p82 = por %p80, %p81
      %p83 = scmp.ne.s32.totalorder %s75, %s77
      %p84 = scmp.eq.s32.totalorder %s25, 1
      %p85 = por %p83, %p84
      %p86 = scmp.ne.s32.totalorder %s77, %s78
      %p87 = scmp.eq.s32.totalorder %s25, 0
      %p88 = por %p86, %p87
      %p89 = scmp.ne.s32.totalorder %s77, %s78
      %p90 = scmp.eq.s32.totalorder %s26, 1
      %p91 = por %p89, %p90
      %p93 = scmp.ne.s32.totalorder %s78, %s92
      %p94 = scmp.eq.s32.totalorder %s26, 0
      %p95 = por %p93, %p94
      %s97 = sadd.s32 %s96, 1
      %p100 = scmp.eq.s32.totalorder %s20, 1
      %p101 = scmp.ne.s32.totalorder %s96, %s98
      %p102 = scmp.eq.s32.totalorder %s20, 0
      %p103 = por %p101, %p102
      %p104 = scmp.ne.s32.totalorder %s96, %s98
      %p105 = scmp.eq.s32.totalorder %s25, 1
      %p106 = por %p104, %p105
      %p107 = scmp.ne.s32.totalorder %s98, %s99
      %p108 = scmp.eq.s32.totalorder %s25, 0
      %p109 = por %p107, %p108
      %p110 = scmp.ne.s32.totalorder %s98, %s99
      %p111 = scmp.eq.s32.totalorder %s26, 1
      %p112 = por %p110, %p111
      %p114 = scmp.ne.s32.totalorder %s99, %s113
      %p115 = scmp.eq.s32.totalorder %s26, 0
      %p116 = por %p114, %p115
      %s118 = sadd.s32 %s117, 1
      %p121 = scmp.eq.s32.totalorder %s20, 1
      %p122 = scmp.ne.s32.totalorder %s117, %s119
      %p123 = scmp.eq.s32.totalorder %s20, 0
      %p124 = por %p122, %p123
      %p125 = scmp.ne.s32.totalorder %s117, %s119
      %p126 = scmp.eq.s32.totalorder %s25, 1
      %p127 = por %p125, %p126
      %p128 = scmp.ne.s32.totalorder %s119, %s120
      %p129 = scmp.eq.s32.totalorder %s25, 0
      %p130 = por %p128, %p129
      %p131 = scmp.ne.s32.totalorder %s119, %s120
      %p132 = scmp.eq.s32.totalorder %s26, 1
      %p133 = por %p131, %p132
      %p135 = scmp.ne.s32.totalorder %s120, %s134
      %p136 = scmp.eq.s32.totalorder %s26, 0
      %p137 = por %p135, %p136
      %s139 = sadd.s32 %s138, 1
      %p142 = scmp.eq.s32.totalorder %s20, 1
      %p143 = scmp.ne.s32.totalorder %s138, %s140
      %p144 = scmp.eq.s32.totalorder %s20, 0
      %p145 = por %p143, %p144
      %p146 = scmp.ne.s32.totalorder %s138, %s140
      %p147 = scmp.eq.s32.totalorder %s25, 1
      %p148 = por %p146, %p147
      %p149 = scmp.ne.s32.totalorder %s140, %s141
      %p150 = scmp.eq.s32.totalorder %s25, 0
      %p151 = por %p149, %p150
      %p152 = scmp.ne.s32.totalorder %s140, %s141
      %p153 = scmp.eq.s32.totalorder %s26, 1
      %p154 = por %p152, %p153
      %p156 = scmp.ne.s32.totalorder %s141, %s155
      %p157 = scmp.eq.s32.totalorder %s26, 0
      %p158 = por %p156, %p157
      %s160 = sadd.s32 %s159, 1
      %p163 = scmp.eq.s32.totalorder %s20, 1
      %p164 = scmp.ne.s32.totalorder %s159, %s161
      %p165 = scmp.eq.s32.totalorder %s20, 0
      %p166 = por %p164, %p165
      %p167 = scmp.ne.s32.totalorder %s159, %s161
      %p168 = scmp.eq.s32.totalorder %s25, 1
      %p169 = por %p167, %p168
      %p170 = scmp.ne.s32.totalorder %s161, %s162
      %p171 = scmp.eq.s32.totalorder %s25, 0
      %p172 = por %p170, %p171
      %p173 = scmp.ne.s32.totalorder %s161, %s162
      %p174 = scmp.eq.s32.totalorder %s26, 1
      %p175 = por %p173, %p174
      %p177 = scmp.ne.s32.totalorder %s162, %s176
      %p178 = scmp.eq.s32.totalorder %s26, 0
      %p179 = por %p177, %p178
      %s180 = ssub.s32 %s20, %s27
      %p181 = scmp.eq.s32.totalorder %s180, 0
      %s183 = sadd.s32 %s182, 1
      %s184 = scalar_select %p181, %s182, %s183
      %p187 = pneg %p181
      %p188 = scmp.eq.s32.totalorder %s20, 1
      %p189 = por %p187, %p188
      %p190 = scmp.ne.s32.totalorder %s182, %s185
      %p191 = scmp.eq.s32.totalorder %s20, 0
      %p192 = por %p190, %p191
      %p193 = scmp.ne.s32.totalorder %s182, %s185
      %p194 = scmp.eq.s32.totalorder %s25, 1
      %p195 = por %p193, %p194
      %p196 = scmp.ne.s32.totalorder %s185, %s186
      %p197 = scmp.eq.s32.totalorder %s25, 0
      %p198 = por %p196, %p197
      %p199 = scmp.ne.s32.totalorder %s185, %s186
      %p200 = scmp.eq.s32.totalorder %s26, 1
      %p201 = por %p199, %p200
      %p203 = scmp.ne.s32.totalorder %s186, %s202
      %p204 = scmp.eq.s32.totalorder %s26, 0
      %p205 = por %p203, %p204
      %p206 = scmp.le.s32.totalorder 1, %s20
      %p207 = scmp.lt.s32.totalorder %s20, 3
      %p208 = pnand %p206, %p207
      %p209 = pneg %p208
      // Predicated region
      $region9: #{tpu_custom_call.1} parent=5 // pred_check
        _
      $region10: #{tpu_custom_call.1} parent=5 // pred_check_branch
        %211 = sbr.rel (%p208) target = $region12
      $region11: #{tpu_custom_call.1} parent=5 // pred_region
        %s212 = ssub.s32 %s20, 1
        // Predicated region
        $region13: #{tpu_custom_call.1} parent=11 // pred_check
          %p213 = pneg %p67
        $region14: #{tpu_custom_call.1} parent=11 // pred_check_branch
          %215 = sbr.rel (%p213) target = $region16
        $region15: #{tpu_custom_call.1} parent=11 // pred_region
          _
        $region16: #{tpu_custom_call.1} parent=11 // pred_fallthru
          _
        // Predicated region
        $region17: #{tpu_custom_call.1} parent=11 // pred_check
          %p216 = pneg %p88
        $region18: #{tpu_custom_call.1} parent=11 // pred_check_branch
          %218 = sbr.rel (%p216) target = $region20
        $region19: #{tpu_custom_call.1} parent=11 // pred_region
          _
        $region20: #{tpu_custom_call.1} parent=11 // pred_fallthru
          _
        // Predicated region
        $region21: #{tpu_custom_call.1} parent=11 // pred_check
          %p219 = pneg %p109
        $region22: #{tpu_custom_call.1} parent=11 // pred_check_branch
          %221 = sbr.rel (%p219) target = $region24
        $region23: #{tpu_custom_call.1} parent=11 // pred_region
          _
        $region24: #{tpu_custom_call.1} parent=11 // pred_fallthru
          _
        // Predicated region
        $region25: #{tpu_custom_call.1} parent=11 // pred_check
          %p222 = pneg %p130
        $region26: #{tpu_custom_call.1} parent=11 // pred_check_branch
          %224 = sbr.rel (%p222) target = $region28
        $region27: #{tpu_custom_call.1} parent=11 // pred_region
          _
        $region28: #{tpu_custom_call.1} parent=11 // pred_fallthru
          _
        // Predicated region
        $region29: #{tpu_custom_call.1} parent=11 // pred_check
          %p225 = pneg %p151
        $region30: #{tpu_custom_call.1} parent=11 // pred_check_branch
          %227 = sbr.rel (%p225) target = $region32
        $region31: #{tpu_custom_call.1} parent=11 // pred_region
          _
        $region32: #{tpu_custom_call.1} parent=11 // pred_fallthru
          _
        // Predicated region
        $region33: #{tpu_custom_call.1} parent=11 // pred_check
          %p228 = pneg %p172
        $region34: #{tpu_custom_call.1} parent=11 // pred_check_branch
          %230 = sbr.rel (%p228) target = $region36
        $region35: #{tpu_custom_call.1} parent=11 // pred_region
          %232 = vsyncadd [#allocation5], 0
          %s234 = sshll.u32 %s6, 4
          %s235 = int_to_ptr.vmem [resolvable:$true] %s234
          %237 = dma.vmem_to_smem %s235, 16, [#allocation6], [#allocation5]
        $region36: #{tpu_custom_call.1} parent=11 // pred_fallthru
          _
      $region12: #{tpu_custom_call.1} parent=5 // pred_fallthru
        _
      %p238 = scmp.lt.s32.totalorder %s20, 2
      // Predicated region
      $region37: #{tpu_custom_call.1} parent=5 // pred_check
        %p239 = pneg %p238
      $region38: #{tpu_custom_call.1} parent=5 // pred_check_branch
        %241 = sbr.rel (%p239) target = $region40
      $region39: #{tpu_custom_call.1} parent=5 // pred_region
        // Predicated region
        $region41: #{tpu_custom_call.1} parent=39 // pred_check
          %p242 = pneg %p40
        $region42: #{tpu_custom_call.1} parent=39 // pred_check_branch
          %244 = sbr.rel (%p242) target = $region44
        $region43: #{tpu_custom_call.1} parent=39 // pred_region
          %s245 = sand.u32 %s30, 1
          %s246 = scalar_lea.sflag [#allocation3], %s245
          %s247 = sand.u32 %s30, 1
          %s248 = smul.addr %s247, 256
          %s249 = scalar_lea.vmem [#allocation2], %s248
          %s250 = smul.u32 32, %s20
          %252 = vsyncadd %s246, 0
          %s253 = smul.addr %s250, 8
          %s254 = scalar_lea.hbm %s0, %s253
          %s255 = sshll.u32 %s254, 4
          %s256 = int_to_ptr.hbm [resolvable:$true] %s255
          %s257 = sshll.u32 %s249, 4
          %s258 = int_to_ptr.vmem [resolvable:$true] %s257
          %263 = dma.hbm_to_vmem [thread:$0]  %s256, 4096, %s258, %s246, 128, 128, 8
        $region44: #{tpu_custom_call.1} parent=39 // pred_fallthru
          _
      $region40: #{tpu_custom_call.1} parent=5 // pred_fallthru
        _
      %p264 = scmp.le.s32.totalorder 1, %s20
      %p265 = scmp.lt.s32.totalorder %s20, 3
      %p266 = pnand %p264, %p265
      %p267 = pneg %p266
      // Predicated region
      $region45: #{tpu_custom_call.1} parent=5 // pred_check
        _
      $region46: #{tpu_custom_call.1} parent=5 // pred_check_branch
        %269 = sbr.rel (%p266) target = $region48
      $region47: #{tpu_custom_call.1} parent=5 // pred_region
        %s270 = ssub.s32 %s20, 1
        %s271 = sand.u32 %s33, 1
        %s272 = scalar_lea.sflag [#allocation3], %s271
        %s273 = sand.u32 %s33, 1
        %s274 = smul.addr %s273, 256
        %s275 = scalar_lea.vmem [#allocation2], %s274
        // Predicated region
        $region49: #{tpu_custom_call.1} parent=47 // pred_check
          %p276 = pneg %p46
        $region50: #{tpu_custom_call.1} parent=47 // pred_check_branch
          %278 = sbr.rel (%p276) target = $region52
        $region51: #{tpu_custom_call.1} parent=47 // pred_region
          %280 = dma.done %s272, 4096
        $region52: #{tpu_custom_call.1} parent=47 // pred_fallthru
          _
        // Predicated region
        $region53: #{tpu_custom_call.1} parent=47 // pred_check
          %p281 = pneg %p172
        $region54: #{tpu_custom_call.1} parent=47 // pred_check_branch
          %283 = sbr.rel (%p281) target = $region56
        $region55: #{tpu_custom_call.1} parent=47 // pred_region
          %285 = dma.done [#allocation5], 16
        $region56: #{tpu_custom_call.1} parent=47 // pred_fallthru
          _
        %286 = sfence
        %s287 = sand.u32 %s33, 1
        %s288 = scalar_lea.sflag [#allocation3], %s287
        %s289 = sand.u32 %s33, 1
        %s290 = smul.addr %s289, 256
        %s291 = scalar_lea.vmem [#allocation2], %s290
        %p292 = pneg %p46
        %p293 = pneg %p43
        %p294 = pneg %p67
        %p295 = pneg %p64
        %p296 = pneg %p88
        %p297 = pneg %p85
        %p298 = pneg %p109
        %p299 = pneg %p106
        %p300 = pneg %p130
        %p301 = pneg %p127
        %p302 = pneg %p151
        %p303 = pneg %p148
        %p304 = pneg %p172
        %p305 = pneg %p169
        %p306 = pneg %p198
        %p307 = pneg %p195
        %s308 = sand.u32 %s185, 1
        %s309 = scalar_lea.sflag [#allocation4], %s308
        %s310 = sand.u32 %s185, 1
        %s311 = smul.addr %s310, 2
        %s312 = scalar_lea.vmem [#allocation7], %s311
        %s313 = smul.u32 32, %s25
        %s314 = smul.u32 2, %s25
        %s315 = sld [smem:[#allocation6]]
        %s316 = sld [smem:[#allocation6 + $0x1]]
        %s317 = sld [smem:[#allocation6 + $0x2]]
        %s318 = sld [smem:[#allocation6 + $0x3]]
        %v319 = vld [vmem:[%s275] sm:$0xff]
        %v320 = vld [vmem:[%s275 + $0x8] sm:$0xff]
        %v321 = vld [vmem:[%s275 + $0x10] sm:$0xff]
        %v322 = vld [vmem:[%s275 + $0x18] sm:$0xff]
        %v323 = vld [vmem:[%s275 + $0x20] sm:$0xff]
        %v324 = vld [vmem:[%s275 + $0x28] sm:$0xff]
        %v325 = vld [vmem:[%s275 + $0x30] sm:$0xff]
        %v326 = vld [vmem:[%s275 + $0x38] sm:$0xff]
        %v327 = vld [vmem:[%s275 + $0x40] sm:$0xff]
        %v328 = vld [vmem:[%s275 + $0x48] sm:$0xff]
        %v329 = vld [vmem:[%s275 + $0x50] sm:$0xff]
        %v330 = vld [vmem:[%s275 + $0x58] sm:$0xff]
        %v331 = vld [vmem:[%s275 + $0x60] sm:$0xff]
        %v332 = vld [vmem:[%s275 + $0x68] sm:$0xff]
        %v333 = vld [vmem:[%s275 + $0x70] sm:$0xff]
        %v334 = vld [vmem:[%s275 + $0x78] sm:$0xff]
        %v335 = vld [vmem:[%s275 + $0x80] sm:$0xff]
        %v336 = vld [vmem:[%s275 + $0x88] sm:$0xff]
        %v337 = vld [vmem:[%s275 + $0x90] sm:$0xff]
        %v338 = vld [vmem:[%s275 + $0x98] sm:$0xff]
        %v339 = vld [vmem:[%s275 + $0xa0] sm:$0xff]
        %v340 = vld [vmem:[%s275 + $0xa8] sm:$0xff]
        %v341 = vld [vmem:[%s275 + $0xb0] sm:$0xff]
        %v342 = vld [vmem:[%s275 + $0xb8] sm:$0xff]
        %v343 = vld [vmem:[%s275 + $0xc0] sm:$0xff]
        %v344 = vld [vmem:[%s275 + $0xc8] sm:$0xff]
        %v345 = vld [vmem:[%s275 + $0xd0] sm:$0xff]
        %v346 = vld [vmem:[%s275 + $0xd8] sm:$0xff]
        %v347 = vld [vmem:[%s275 + $0xe0] sm:$0xff]
        %v348 = vld [vmem:[%s275 + $0xe8] sm:$0xff]
        %v349 = vld [vmem:[%s275 + $0xf0] sm:$0xff]
        %v350 = vld [vmem:[%s275 + $0xf8] sm:$0xff]
        %v351 = vpack.c.bf16 %v320, %v319
        %v352 = vpack.c.bf16 %v322, %v321
        %v353 = vpack.c.bf16 %v324, %v323
        %v354 = vpack.c.bf16 %v326, %v325
        %v355 = vpack.c.bf16 %v328, %v327
        %v356 = vpack.c.bf16 %v330, %v329
        %v357 = vpack.c.bf16 %v332, %v331
        %v358 = vpack.c.bf16 %v334, %v333
        %v359 = vpack.c.bf16 %v336, %v335
        %v360 = vpack.c.bf16 %v338, %v337
        %v361 = vpack.c.bf16 %v340, %v339
        %v362 = vpack.c.bf16 %v342, %v341
        %v363 = vpack.c.bf16 %v344, %v343
        %v364 = vpack.c.bf16 %v346, %v345
        %v365 = vpack.c.bf16 %v348, %v347
        %v366 = vpack.c.bf16 %v350, %v349
        %v367 = vld [vmem:[%s1] sm:$0xf]
        %v368 = vld [vmem:[%s1 + $0x4] sm:$0xf]
        %v369 = vld [vmem:[%s1 + $0x8] sm:$0xf]
        %v370 = vld [vmem:[%s1 + $0xc] sm:$0xf]
        %v371 = vld [vmem:[%s1 + $0x10] sm:$0xf]
        %v372 = vld [vmem:[%s1 + $0x14] sm:$0xf]
        %v373 = vld [vmem:[%s1 + $0x18] sm:$0xf]
        %v374 = vld [vmem:[%s1 + $0x1c] sm:$0xf]
        %v375 = vld [vmem:[%s1 + $0x20] sm:$0xf]
        %v376 = vld [vmem:[%s1 + $0x24] sm:$0xf]
        %v377 = vld [vmem:[%s1 + $0x28] sm:$0xf]
        %v378 = vld [vmem:[%s1 + $0x2c] sm:$0xf]
        %v379 = vld [vmem:[%s1 + $0x30] sm:$0xf]
        %v380 = vld [vmem:[%s1 + $0x34] sm:$0xf]
        %v381 = vld [vmem:[%s1 + $0x38] sm:$0xf]
        %v382 = vld [vmem:[%s1 + $0x3c] sm:$0xf]
        %v383 = vld [vmem:[%s2] sm:$0x1]
        %v385 = vperm.slane %v383, 0
        %v403 = vunpack.c.l.b16 %v367
        %v404 = vunpack.c.l.b16 %v368
        %v405 = vunpack.c.l.b16 %v369
        %v406 = vunpack.c.l.b16 %v370
        %v407 = vunpack.c.l.b16 %v371
        %v408 = vunpack.c.l.b16 %v372
        %v409 = vunpack.c.l.b16 %v373
        %v410 = vunpack.c.l.b16 %v374
        %v411 = vunpack.c.l.b16 %v375
        %v412 = vunpack.c.l.b16 %v376
        %v413 = vunpack.c.l.b16 %v377
        %v414 = vunpack.c.l.b16 %v378
        %v415 = vunpack.c.l.b16 %v379
        %v416 = vunpack.c.l.b16 %v380
        %v417 = vunpack.c.l.b16 %v381
        %v418 = vunpack.c.l.b16 %v382
        %v419 = vpack.c.b16 %v404, %v403
        %v420 = vpack.c.b16 %v406, %v405
        %v421 = vpack.c.b16 %v408, %v407
        %v422 = vpack.c.b16 %v410, %v409
        %v423 = vpack.c.b16 %v412, %v411
        %v424 = vpack.c.b16 %v414, %v413
        %v425 = vpack.c.b16 %v416, %v415
        %v426 = vpack.c.b16 %v418, %v417
        %435 = vmatpush.bf16.msra.mxu0 %v426
        %436 = vmatpush.bf16.msra.mxu0 %v425
        %437 = vmatpush.bf16.msra.mxu0 %v424
        %438 = vmatpush.bf16.msra.mxu0 %v423
        %439 = vmatpush.bf16.msra.mxu0 %v422
        %440 = vmatpush.bf16.msra.mxu0 %v421
        %441 = vmatpush.bf16.msra.mxu0 %v420
        %442 = vmatpush.bf16.msra.mxu0 %v419
        %443 = vmatmul.bf16.gmra.mxu0 %v351
        %v444 = vpop.f32.mrf.mxu0
        %v445 = vadd.f32 %v385, %v444
        %v446 = vpop.f32.mrf.mxu0
        %v447 = vadd.f32 %v385, %v446
        %448 = vmatmul.bf16.gmra.mxu0 %v352
        %v449 = vpop.f32.mrf.mxu0
        %v450 = vadd.f32 %v385, %v449
        %v451 = vpop.f32.mrf.mxu0
        %v452 = vadd.f32 %v385, %v451
        %453 = vmatmul.bf16.gmra.mxu0 %v353
        %v454 = vpop.f32.mrf.mxu0
        %v455 = vadd.f32 %v385, %v454
        %v456 = vpop.f32.mrf.mxu0
        %v457 = vadd.f32 %v385, %v456
        %458 = vmatmul.bf16.gmra.mxu0 %v354
        %v459 = vpop.f32.mrf.mxu0
        %v460 = vadd.f32 %v385, %v459
        %v461 = vpop.f32.mrf.mxu0
        %v462 = vadd.f32 %v385, %v461
        %463 = vmatmul.bf16.gmra.mxu0 %v355
        %v464 = vpop.f32.mrf.mxu0
        %v465 = vadd.f32 %v385, %v464
        %v466 = vpop.f32.mrf.mxu0
        %v467 = vadd.f32 %v385, %v466
        %468 = vmatmul.bf16.gmra.mxu0 %v356
        %v469 = vpop.f32.mrf.mxu0
        %v470 = vadd.f32 %v385, %v469
        %v471 = vpop.f32.mrf.mxu0
        %v472 = vadd.f32 %v385, %v471
        %473 = vmatmul.bf16.gmra.mxu0 %v357
        %v474 = vpop.f32.mrf.mxu0
        %v475 = vadd.f32 %v385, %v474
        %v476 = vpop.f32.mrf.mxu0
        %v477 = vadd.f32 %v385, %v476
        %478 = vmatmul.bf16.gmra.mxu0 %v358
        %v479 = vpop.f32.mrf.mxu0
        %v480 = vadd.f32 %v385, %v479
        %v481 = vpop.f32.mrf.mxu0
        %v482 = vadd.f32 %v385, %v481
        %483 = vmatmul.bf16.gmra.mxu0 %v359
        %v484 = vpop.f32.mrf.mxu0
        %v485 = vadd.f32 %v385, %v484
        %v486 = vpop.f32.mrf.mxu0
        %v487 = vadd.f32 %v385, %v486
        %488 = vmatmul.bf16.gmra.mxu0 %v360
        %v489 = vpop.f32.mrf.mxu0
        %v490 = vadd.f32 %v385, %v489
        %v491 = vpop.f32.mrf.mxu0
        %v492 = vadd.f32 %v385, %v491
        %493 = vmatmul.bf16.gmra.mxu0 %v361
        %v494 = vpop.f32.mrf.mxu0
        %v495 = vadd.f32 %v385, %v494
        %v496 = vpop.f32.mrf.mxu0
        %v497 = vadd.f32 %v385, %v496
        %498 = vmatmul.bf16.gmra.mxu0 %v362
        %v499 = vpop.f32.mrf.mxu0
        %v500 = vadd.f32 %v385, %v499
        %v501 = vpop.f32.mrf.mxu0
        %v502 = vadd.f32 %v385, %v501
        %503 = vmatmul.bf16.gmra.mxu0 %v363
        %v504 = vpop.f32.mrf.mxu0
        %v505 = vadd.f32 %v385, %v504
        %v506 = vpop.f32.mrf.mxu0
        %v507 = vadd.f32 %v385, %v506
        %508 = vmatmul.bf16.gmra.mxu0 %v364
        %v509 = vpop.f32.mrf.mxu0
        %v510 = vadd.f32 %v385, %v509
        %v511 = vpop.f32.mrf.mxu0
        %v512 = vadd.f32 %v385, %v511
        %513 = vmatmul.bf16.gmra.mxu0 %v365
        %v514 = vpop.f32.mrf.mxu0
        %v515 = vadd.f32 %v385, %v514
        %v516 = vpop.f32.mrf.mxu0
        %v517 = vadd.f32 %v385, %v516
        %518 = vmatmul.bf16.gmra.mxu0 %v366
        %v519 = vpop.f32.mrf.mxu0
        %v520 = vadd.f32 %v385, %v519
        %v521 = vpop.f32.mrf.mxu0
        %v522 = vadd.f32 %v385, %v521
        %523 = vdwg.mxu0
        %vm524 = vcmp.ge.f32.partialorder %v445, 0.0
        %vm525 = vcmp.ge.f32.partialorder %v447, 0.0
        %vm526 = vcmp.ge.f32.partialorder %v450, 0.0
        %vm527 = vcmp.ge.f32.partialorder %v452, 0.0
        %vm528 = vcmp.ge.f32.partialorder %v455, 0.0
        %vm529 = vcmp.ge.f32.partialorder %v457, 0.0
        %vm530 = vcmp.ge.f32.partialorder %v460, 0.0
        %vm531 = vcmp.ge.f32.partialorder %v462, 0.0
        %vm532 = vcmp.ge.f32.partialorder %v465, 0.0
        %vm533 = vcmp.ge.f32.partialorder %v467, 0.0
        %vm534 = vcmp.ge.f32.partialorder %v470, 0.0
        %vm535 = vcmp.ge.f32.partialorder %v472, 0.0
        %vm536 = vcmp.ge.f32.partialorder %v475, 0.0
        %vm537 = vcmp.ge.f32.partialorder %v477, 0.0
        %vm538 = vcmp.ge.f32.partialorder %v480, 0.0
        %vm539 = vcmp.ge.f32.partialorder %v482, 0.0
        %vm540 = vcmp.ge.f32.partialorder %v485, 0.0
        %vm541 = vcmp.ge.f32.partialorder %v487, 0.0
        %vm542 = vcmp.ge.f32.partialorder %v490, 0.0
        %vm543 = vcmp.ge.f32.partialorder %v492, 0.0
        %vm544 = vcmp.ge.f32.partialorder %v495, 0.0
        %vm545 = vcmp.ge.f32.partialorder %v497, 0.0
        %vm546 = vcmp.ge.f32.partialorder %v500, 0.0
        %vm547 = vcmp.ge.f32.partialorder %v502, 0.0
        %vm548 = vcmp.ge.f32.partialorder %v505, 0.0
        %vm549 = vcmp.ge.f32.partialorder %v507, 0.0
        %vm550 = vcmp.ge.f32.partialorder %v510, 0.0
        %vm551 = vcmp.ge.f32.partialorder %v512, 0.0
        %vm552 = vcmp.ge.f32.partialorder %v515, 0.0
        %vm553 = vcmp.ge.f32.partialorder %v517, 0.0
        %vm554 = vcmp.ge.f32.partialorder %v520, 0.0
        %vm555 = vcmp.ge.f32.partialorder %v522, 0.0
        %v556 = vstv %s315
        %v557 = vmul.f32 %v556, %v445
        %v558 = vmul.f32 %v556, %v447
        %v559 = vmul.f32 %v556, %v450
        %v560 = vmul.f32 %v556, %v452
        %v561 = vmul.f32 %v556, %v455
        %v562 = vmul.f32 %v556, %v457
        %v563 = vmul.f32 %v556, %v460
        %v564 = vmul.f32 %v556, %v462
        %v565 = vmul.f32 %v556, %v465
        %v566 = vmul.f32 %v556, %v467
        %v567 = vmul.f32 %v556, %v470
        %v568 = vmul.f32 %v556, %v472
        %v569 = vmul.f32 %v556, %v475
        %v570 = vmul.f32 %v556, %v477
        %v571 = vmul.f32 %v556, %v480
        %v572 = vmul.f32 %v556, %v482
        %v573 = vmul.f32 %v556, %v485
        %v574 = vmul.f32 %v556, %v487
        %v575 = vmul.f32 %v556, %v490
        %v576 = vmul.f32 %v556, %v492
        %v577 = vmul.f32 %v556, %v495
        %v578 = vmul.f32 %v556, %v497
        %v579 = vmul.f32 %v556, %v500
        %v580 = vmul.f32 %v556, %v502
        %v581 = vmul.f32 %v556, %v505
        %v582 = vmul.f32 %v556, %v507
        %v583 = vmul.f32 %v556, %v510
        %v584 = vmul.f32 %v556, %v512
        %v585 = vmul.f32 %v556, %v515
        %v586 = vmul.f32 %v556, %v517
        %v587 = vmul.f32 %v556, %v520
        %v588 = vmul.f32 %v556, %v522
        %v589 = vsel %vm524, %v445, %v557
        %v590 = vsel %vm525, %v447, %v558
        %v591 = vsel %vm526, %v450, %v559
        %v592 = vsel %vm527, %v452, %v560
        %v593 = vsel %vm528, %v455, %v561
        %v594 = vsel %vm529, %v457, %v562
        %v595 = vsel %vm530, %v460, %v563
        %v596 = vsel %vm531, %v462, %v564
        %v597 = vsel %vm532, %v465, %v565
        %v598 = vsel %vm533, %v467, %v566
        %v599 = vsel %vm534, %v470, %v567
        %v600 = vsel %vm535, %v472, %v568
        %v601 = vsel %vm536, %v475, %v569
        %v602 = vsel %vm537, %v477, %v570
        %v603 = vsel %vm538, %v480, %v571
        %v604 = vsel %vm539, %v482, %v572
        %v605 = vsel %vm540, %v485, %v573
        %v606 = vsel %vm541, %v487, %v574
        %v607 = vsel %vm542, %v490, %v575
        %v608 = vsel %vm543, %v492, %v576
        %v609 = vsel %vm544, %v495, %v577
        %v610 = vsel %vm545, %v497, %v578
        %v611 = vsel %vm546, %v500, %v579
        %v612 = vsel %vm547, %v502, %v580
        %v613 = vsel %vm548, %v505, %v581
        %v614 = vsel %vm549, %v507, %v582
        %v615 = vsel %vm550, %v510, %v583
        %v616 = vsel %vm551, %v512, %v584
        %v617 = vsel %vm552, %v515, %v585
        %v618 = vsel %vm553, %v517, %v586
        %v619 = vsel %vm554, %v520, %v587
        %v620 = vsel %vm555, %v522, %v588
        %v621 = vpack.c.bf16 %v590, %v589
        %v622 = vpack.c.bf16 %v592, %v591
        %v623 = vpack.c.bf16 %v594, %v593
        %v624 = vpack.c.bf16 %v596, %v595
        %v625 = vpack.c.bf16 %v598, %v597
        %v626 = vpack.c.bf16 %v600, %v599
        %v627 = vpack.c.bf16 %v602, %v601
        %v628 = vpack.c.bf16 %v604, %v603
        %v629 = vpack.c.bf16 %v606, %v605
        %v630 = vpack.c.bf16 %v608, %v607
        %v631 = vpack.c.bf16 %v610, %v609
        %v632 = vpack.c.bf16 %v612, %v611
        %v633 = vpack.c.bf16 %v614, %v613
        %v634 = vpack.c.bf16 %v616, %v615
        %v635 = vpack.c.bf16 %v618, %v617
        %v636 = vpack.c.bf16 %v620, %v619
        %v637 = vld [vmem:[%s3] sm:$0xf]
        %v638 = vld [vmem:[%s3 + $0x4] sm:$0xf]
        %v639 = vld [vmem:[%s3 + $0x8] sm:$0xf]
        %v640 = vld [vmem:[%s3 + $0xc] sm:$0xf]
        %v641 = vld [vmem:[%s3 + $0x10] sm:$0xf]
        %v642 = vld [vmem:[%s3 + $0x14] sm:$0xf]
        %v643 = vld [vmem:[%s3 + $0x18] sm:$0xf]
        %v644 = vld [vmem:[%s3 + $0x1c] sm:$0xf]
        %v645 = vld [vmem:[%s3 + $0x20] sm:$0xf]
        %v646 = vld [vmem:[%s3 + $0x24] sm:$0xf]
        %v647 = vld [vmem:[%s3 + $0x28] sm:$0xf]
        %v648 = vld [vmem:[%s3 + $0x2c] sm:$0xf]
        %v649 = vld [vmem:[%s3 + $0x30] sm:$0xf]
        %v650 = vld [vmem:[%s3 + $0x34] sm:$0xf]
        %v651 = vld [vmem:[%s3 + $0x38] sm:$0xf]
        %v652 = vld [vmem:[%s3 + $0x3c] sm:$0xf]
        %v653 = vld [vmem:[%s4] sm:$0x1]
        %v655 = vperm.slane %v653, 0
        %v673 = vunpack.c.l.b16 %v637
        %v674 = vunpack.c.l.b16 %v638
        %v675 = vunpack.c.l.b16 %v639
        %v676 = vunpack.c.l.b16 %v640
        %v677 = vunpack.c.l.b16 %v641
        %v678 = vunpack.c.l.b16 %v642
        %v679 = vunpack.c.l.b16 %v643
        %v680 = vunpack.c.l.b16 %v644
        %v681 = vunpack.c.l.b16 %v645
        %v682 = vunpack.c.l.b16 %v646
        %v683 = vunpack.c.l.b16 %v647
        %v684 = vunpack.c.l.b16 %v648
        %v685 = vunpack.c.l.b16 %v649
        %v686 = vunpack.c.l.b16 %v650
        %v687 = vunpack.c.l.b16 %v651
        %v688 = vunpack.c.l.b16 %v652
        %v689 = vpack.c.b16 %v674, %v673
        %v690 = vpack.c.b16 %v676, %v675
        %v691 = vpack.c.b16 %v678, %v677
        %v692 = vpack.c.b16 %v680, %v679
        %v693 = vpack.c.b16 %v682, %v681
        %v694 = vpack.c.b16 %v684, %v683
        %v695 = vpack.c.b16 %v686, %v685
        %v696 = vpack.c.b16 %v688, %v687
        %705 = vmatpush.bf16.msra.mxu0 %v696
        %706 = vmatpush.bf16.msra.mxu0 %v695
        %707 = vmatpush.bf16.msra.mxu0 %v694
        %708 = vmatpush.bf16.msra.mxu0 %v693
        %709 = vmatpush.bf16.msra.mxu0 %v692
        %710 = vmatpush.bf16.msra.mxu0 %v691
        %711 = vmatpush.bf16.msra.mxu0 %v690
        %712 = vmatpush.bf16.msra.mxu0 %v689
        %713 = vmatmul.bf16.gmra.mxu0 %v621
        %v714 = vpop.f32.mrf.mxu0
        %v715 = vadd.f32 %v655, %v714
        %v716 = vpop.f32.mrf.mxu0
        %v717 = vadd.f32 %v655, %v716
        %718 = vmatmul.bf16.gmra.mxu0 %v622
        %v719 = vpop.f32.mrf.mxu0
        %v720 = vadd.f32 %v655, %v719
        %v721 = vpop.f32.mrf.mxu0
        %v722 = vadd.f32 %v655, %v721
        %723 = vmatmul.bf16.gmra.mxu0 %v623
        %v724 = vpop.f32.mrf.mxu0
        %v725 = vadd.f32 %v655, %v724
        %v726 = vpop.f32.mrf.mxu0
        %v727 = vadd.f32 %v655, %v726
        %728 = vmatmul.bf16.gmra.mxu0 %v624
        %v729 = vpop.f32.mrf.mxu0
        %v730 = vadd.f32 %v655, %v729
        %v731 = vpop.f32.mrf.mxu0
        %v732 = vadd.f32 %v655, %v731
        %733 = vmatmul.bf16.gmra.mxu0 %v625
        %v734 = vpop.f32.mrf.mxu0
        %v735 = vadd.f32 %v655, %v734
        %v736 = vpop.f32.mrf.mxu0
        %v737 = vadd.f32 %v655, %v736
        %738 = vmatmul.bf16.gmra.mxu0 %v626
        %v739 = vpop.f32.mrf.mxu0
        %v740 = vadd.f32 %v655, %v739
        %v741 = vpop.f32.mrf.mxu0
        %v742 = vadd.f32 %v655, %v741
        %743 = vmatmul.bf16.gmra.mxu0 %v627
        %v744 = vpop.f32.mrf.mxu0
        %v745 = vadd.f32 %v655, %v744
        %v746 = vpop.f32.mrf.mxu0
        %v747 = vadd.f32 %v655, %v746
        %748 = vmatmul.bf16.gmra.mxu0 %v628
        %v749 = vpop.f32.mrf.mxu0
        %v750 = vadd.f32 %v655, %v749
        %v751 = vpop.f32.mrf.mxu0
        %v752 = vadd.f32 %v655, %v751
        %753 = vmatmul.bf16.gmra.mxu0 %v629
        %v754 = vpop.f32.mrf.mxu0
        %v755 = vadd.f32 %v655, %v754
        %v756 = vpop.f32.mrf.mxu0
        %v757 = vadd.f32 %v655, %v756
        %758 = vmatmul.bf16.gmra.mxu0 %v630
        %v759 = vpop.f32.mrf.mxu0
        %v760 = vadd.f32 %v655, %v759
        %v761 = vpop.f32.mrf.mxu0
        %v762 = vadd.f32 %v655, %v761
        %763 = vmatmul.bf16.gmra.mxu0 %v631
        %v764 = vpop.f32.mrf.mxu0
        %v765 = vadd.f32 %v655, %v764
        %v766 = vpop.f32.mrf.mxu0
        %v767 = vadd.f32 %v655, %v766
        %768 = vmatmul.bf16.gmra.mxu0 %v632
        %v769 = vpop.f32.mrf.mxu0
        %v770 = vadd.f32 %v655, %v769
        %v771 = vpop.f32.mrf.mxu0
        %v772 = vadd.f32 %v655, %v771
        %773 = vmatmul.bf16.gmra.mxu0 %v633
        %v774 = vpop.f32.mrf.mxu0
        %v775 = vadd.f32 %v655, %v774
        %v776 = vpop.f32.mrf.mxu0
        %v777 = vadd.f32 %v655, %v776
        %778 = vmatmul.bf16.gmra.mxu0 %v634
        %v779 = vpop.f32.mrf.mxu0
        %v780 = vadd.f32 %v655, %v779
        %v781 = vpop.f32.mrf.mxu0
        %v782 = vadd.f32 %v655, %v781
        %783 = vmatmul.bf16.gmra.mxu0 %v635
        %v784 = vpop.f32.mrf.mxu0
        %v785 = vadd.f32 %v655, %v784
        %v786 = vpop.f32.mrf.mxu0
        %v787 = vadd.f32 %v655, %v786
        %788 = vmatmul.bf16.gmra.mxu0 %v636
        %v789 = vpop.f32.mrf.mxu0
        %v790 = vadd.f32 %v655, %v789
        %v791 = vpop.f32.mrf.mxu0
        %v792 = vadd.f32 %v655, %v791
        %793 = vdwg.mxu0
        %vm794 = vcmp.ge.f32.partialorder %v715, 0.0
        %vm795 = vcmp.ge.f32.partialorder %v717, 0.0
        %vm796 = vcmp.ge.f32.partialorder %v720, 0.0
        %vm797 = vcmp.ge.f32.partialorder %v722, 0.0
        %vm798 = vcmp.ge.f32.partialorder %v725, 0.0
        %vm799 = vcmp.ge.f32.partialorder %v727, 0.0
        %vm800 = vcmp.ge.f32.partialorder %v730, 0.0
        %vm801 = vcmp.ge.f32.partialorder %v732, 0.0
        %vm802 = vcmp.ge.f32.partialorder %v735, 0.0
        %vm803 = vcmp.ge.f32.partialorder %v737, 0.0
        %vm804 = vcmp.ge.f32.partialorder %v740, 0.0
        %vm805 = vcmp.ge.f32.partialorder %v742, 0.0
        %vm806 = vcmp.ge.f32.partialorder %v745, 0.0
        %vm807 = vcmp.ge.f32.partialorder %v747, 0.0
        %vm808 = vcmp.ge.f32.partialorder %v750, 0.0
        %vm809 = vcmp.ge.f32.partialorder %v752, 0.0
        %vm810 = vcmp.ge.f32.partialorder %v755, 0.0
        %vm811 = vcmp.ge.f32.partialorder %v757, 0.0
        %vm812 = vcmp.ge.f32.partialorder %v760, 0.0
        %vm813 = vcmp.ge.f32.partialorder %v762, 0.0
        %vm814 = vcmp.ge.f32.partialorder %v765, 0.0
        %vm815 = vcmp.ge.f32.partialorder %v767, 0.0
        %vm816 = vcmp.ge.f32.partialorder %v770, 0.0
        %vm817 = vcmp.ge.f32.partialorder %v772, 0.0
        %vm818 = vcmp.ge.f32.partialorder %v775, 0.0
        %vm819 = vcmp.ge.f32.partialorder %v777, 0.0
        %vm820 = vcmp.ge.f32.partialorder %v780, 0.0
        %vm821 = vcmp.ge.f32.partialorder %v782, 0.0
        %vm822 = vcmp.ge.f32.partialorder %v785, 0.0
        %vm823 = vcmp.ge.f32.partialorder %v787, 0.0
        %vm824 = vcmp.ge.f32.partialorder %v790, 0.0
        %vm825 = vcmp.ge.f32.partialorder %v792, 0.0
        %v826 = vstv %s316
        %v827 = vmul.f32 %v826, %v715
        %v828 = vmul.f32 %v826, %v717
        %v829 = vmul.f32 %v826, %v720
        %v830 = vmul.f32 %v826, %v722
        %v831 = vmul.f32 %v826, %v725
        %v832 = vmul.f32 %v826, %v727
        %v833 = vmul.f32 %v826, %v730
        %v834 = vmul.f32 %v826, %v732
        %v835 = vmul.f32 %v826, %v735
        %v836 = vmul.f32 %v826, %v737
        %v837 = vmul.f32 %v826, %v740
        %v838 = vmul.f32 %v826, %v742
        %v839 = vmul.f32 %v826, %v745
        %v840 = vmul.f32 %v826, %v747
        %v841 = vmul.f32 %v826, %v750
        %v842 = vmul.f32 %v826, %v752
        %v843 = vmul.f32 %v826, %v755
        %v844 = vmul.f32 %v826, %v757
        %v845 = vmul.f32 %v826, %v760
        %v846 = vmul.f32 %v826, %v762
        %v847 = vmul.f32 %v826, %v765
        %v848 = vmul.f32 %v826, %v767
        %v849 = vmul.f32 %v826, %v770
        %v850 = vmul.f32 %v826, %v772
        %v851 = vmul.f32 %v826, %v775
        %v852 = vmul.f32 %v826, %v777
        %v853 = vmul.f32 %v826, %v780
        %v854 = vmul.f32 %v826, %v782
        %v855 = vmul.f32 %v826, %v785
        %v856 = vmul.f32 %v826, %v787
        %v857 = vmul.f32 %v826, %v790
        %v858 = vmul.f32 %v826, %v792
        %v859 = vsel %vm794, %v715, %v827
        %v860 = vsel %vm795, %v717, %v828
        %v861 = vsel %vm796, %v720, %v829
        %v862 = vsel %vm797, %v722, %v830
        %v863 = vsel %vm798, %v725, %v831
        %v864 = vsel %vm799, %v727, %v832
        %v865 = vsel %vm800, %v730, %v833
        %v866 = vsel %vm801, %v732, %v834
        %v867 = vsel %vm802, %v735, %v835
        %v868 = vsel %vm803, %v737, %v836
        %v869 = vsel %vm804, %v740, %v837
        %v870 = vsel %vm805, %v742, %v838
        %v871 = vsel %vm806, %v745, %v839
        %v872 = vsel %vm807, %v747, %v840
        %v873 = vsel %vm808, %v750, %v841
        %v874 = vsel %vm809, %v752, %v842
        %v875 = vsel %vm810, %v755, %v843
        %v876 = vsel %vm811, %v757, %v844
        %v877 = vsel %vm812, %v760, %v845
        %v878 = vsel %vm813, %v762, %v846
        %v879 = vsel %vm814, %v765, %v847
        %v880 = vsel %vm815, %v767, %v848
        %v881 = vsel %vm816, %v770, %v849
        %v882 = vsel %vm817, %v772, %v850
        %v883 = vsel %vm818, %v775, %v851
        %v884 = vsel %vm819, %v777, %v852
        %v885 = vsel %vm820, %v780, %v853
        %v886 = vsel %vm821, %v782, %v854
        %v887 = vsel %vm822, %v785, %v855
        %v888 = vsel %vm823, %v787, %v856
        %v889 = vsel %vm824, %v790, %v857
        %v890 = vsel %vm825, %v792, %v858
        %v891 = vld [vmem:[%s5] sm:$0x1]
        %v892 = vpack.c.bf16 %v860, %v859
        %v893 = vpack.c.bf16 %v862, %v861
        %v894 = vpack.c.bf16 %v864, %v863
        %v895 = vpack.c.bf16 %v866, %v865
        %v896 = vpack.c.bf16 %v868, %v867
        %v897 = vpack.c.bf16 %v870, %v869
        %v898 = vpack.c.bf16 %v872, %v871
        %v899 = vpack.c.bf16 %v874, %v873
        %v900 = vpack.c.bf16 %v876, %v875
        %v901 = vpack.c.bf16 %v878, %v877
        %v902 = vpack.c.bf16 %v880, %v879
        %v903 = vpack.c.bf16 %v882, %v881
        %v904 = vpack.c.bf16 %v884, %v883
        %v905 = vpack.c.bf16 %v886, %v885
        %v906 = vpack.c.bf16 %v888, %v887
        %v907 = vpack.c.bf16 %v890, %v889
        %v908 = vstv %s318
        %vm909 = vcmask 523264
        %v911 = vsel %vm909, %v891, 0
        %v914 = vsel %vm909, %v892, 0
        %v917 = vsel %vm909, %v893, 0
        %v920 = vsel %vm909, %v894, 0
        %v923 = vsel %vm909, %v895, 0
        %v926 = vsel %vm909, %v896, 0
        %v929 = vsel %vm909, %v897, 0
        %v932 = vsel %vm909, %v898, 0
        %v935 = vsel %vm909, %v899, 0
        %v938 = vsel %vm909, %v900, 0
        %v941 = vsel %vm909, %v901, 0
        %v944 = vsel %vm909, %v902, 0
        %v947 = vsel %vm909, %v903, 0
        %v950 = vsel %vm909, %v904, 0
        %v953 = vsel %vm909, %v905, 0
        %v956 = vsel %vm909, %v906, 0
        %v959 = vsel %vm909, %v907, 0
        %961 = vmatpush.bf16.xpose.msra.mxu0 %v935
        %962 = vmatpush.bf16.xpose.msra.mxu0 %v932
        %963 = vmatpush.bf16.xpose.msra.mxu0 %v929
        %964 = vmatpush.bf16.xpose.msra.mxu0 %v926
        %965 = vmatpush.bf16.xpose.msra.mxu0 %v923
        %966 = vmatpush.bf16.xpose.msra.mxu0 %v920
        %967 = vmatpush.bf16.xpose.msra.mxu0 %v917
        %968 = vmatpush.bf16.xpose.msra.mxu0 %v914
        %969 = vmatmul.bf16.gmra.mxu0 %v911
        %v970 = vpop.f32.mrf.mxu0
        %v971 = vadd.f32 %v908, %v970
        %v972 = vpop.f32.mrf.mxu0
        %973 = vdwg.mxu0
        %974 = vmatpush.bf16.xpose.msra.mxu0 %v959
        %975 = vmatpush.bf16.xpose.msra.mxu0 %v956
        %976 = vmatpush.bf16.xpose.msra.mxu0 %v953
        %977 = vmatpush.bf16.xpose.msra.mxu0 %v950
        %978 = vmatpush.bf16.xpose.msra.mxu0 %v947
        %979 = vmatpush.bf16.xpose.msra.mxu0 %v944
        %980 = vmatpush.bf16.xpose.msra.mxu0 %v941
        %981 = vmatpush.bf16.xpose.msra.mxu0 %v938
        %982 = vmatmul.bf16.gmra.mxu0 %v911
        %v983 = vpop.f32.mrf.mxu0
        %v984 = vadd.f32 %v908, %v983
        %v985 = vpop.f32.mrf.mxu0
        %986 = vdwg.mxu0
        %vm987 = vcmp.ge.f32.partialorder %v971, 0.0
        %vm988 = vcmp.ge.f32.partialorder %v984, 0.0
        %v989 = vstv %s317
        %v990 = vmul.f32 %v989, %v971
        %v991 = vmul.f32 %v989, %v984
        %v992 = vsel %vm987, %v971, %v990
        %v993 = vsel %vm988, %v984, %v991
        %v996 = vrot.slane %v993, 7
        %vm997 = vcmask 1040384
        %v998 = vsel %vm997, %v992, %v996
        %v1000 = vlaneseq
        %vm1001 = vcmp.ge.s32.totalorder %v1000, 0
        %vm1002 = vcmp.lt.s32.totalorder %v1000, 256
        %vm1003 = vmand %vm1001, %vm1002
        %1004 = vst.msk [vmem:[%s312] sm:$0x3] %vm1003, %v998
        %s1005 = sand.u32 %s185, 1
        %s1006 = scalar_lea.sflag [#allocation4], %s1005
        %s1007 = sand.u32 %s185, 1
        %s1008 = smul.addr %s1007, 2
        %s1009 = scalar_lea.vmem [#allocation7], %s1008
        // Predicated region
        $region57: #{tpu_custom_call.1} parent=47 // pred_check
          %p1010 = pneg %p195
        $region58: #{tpu_custom_call.1} parent=47 // pred_check_branch
          %1012 = sbr.rel (%p1010) target = $region60
        $region59: #{tpu_custom_call.1} parent=47 // pred_region
          %s1013 = smul.u32 2, %s25
          %1015 = vsyncadd %s1006, 0
          %s1016 = scalar_lea.hbm %s7, %s1013
          %s1018 = sshll.u32 %s1009, 4
          %s1019 = int_to_ptr.vmem [resolvable:$true] %s1018
          %s1020 = sshll.u32 %s1016, 4
          %s1021 = int_to_ptr.hbm [resolvable:$true] %s1020
          %1023 = dma.vmem_to_hbm [thread:$0]  %s1019, 32, %s1021, %s1006
        $region60: #{tpu_custom_call.1} parent=47 // pred_fallthru
          _
      $region48: #{tpu_custom_call.1} parent=5 // pred_fallthru
        _
      %p1024 = scmp.le.s32.totalorder 2, %s20
      // Predicated region
      $region61: #{tpu_custom_call.1} parent=5 // pred_check
        %p1025 = pneg %p1024
      $region62: #{tpu_custom_call.1} parent=5 // pred_check_branch
        %1027 = sbr.rel (%p1025) target = $region64
      $region63: #{tpu_custom_call.1} parent=5 // pred_region
        %s1028 = ssub.s32 %s20, 2
        // Predicated region
        $region65: #{tpu_custom_call.1} parent=63 // pred_check
          %p1029 = pneg %p201
        $region66: #{tpu_custom_call.1} parent=63 // pred_check_branch
          %1031 = sbr.rel (%p1029) target = $region68
        $region67: #{tpu_custom_call.1} parent=63 // pred_region
          %s1032 = sand.u32 %s186, 1
          %s1033 = scalar_lea.sflag [#allocation4], %s1032
          %s1034 = sand.u32 %s186, 1
          %s1035 = smul.addr %s1034, 2
          %s1036 = scalar_lea.vmem [#allocation7], %s1035
          %1038 = dma.done %s1033, 32
        $region68: #{tpu_custom_call.1} parent=63 // pred_fallthru
          _
      $region64: #{tpu_custom_call.1} parent=5 // pred_fallthru
        _
    $region6: #{tpu_custom_call.1} parent=1 // loop_footer
      %s24 = sadd.s32 1, %s20
    $region7: #{tpu_custom_call.1} parent=1 // loop_footer_branch
      %19 = sbr.rel target = $region3
    $region8: #{tpu_custom_call.1} parent=1 // loop_exit
      _
    %1039 = vsyncpa [#allocation3], 1
    %s1040 = scalar_lea.sflag [#allocation3], 1
    %1041 = vsyncpa %s1040, 1
    %1042 = vsyncpa [#allocation4], 1
    %s1043 = scalar_lea.sflag [#allocation4], 1
    %1044 = vsyncpa %s1043, 1
    %1045 = vsyncpa [#allocation5], 1
    %s1046 = scalar_lea.sflag [#allocation5], 1
    %1047 = vsyncpa %s1046, 1

</llo_original>
